<compile_context>
chip_gen: v7x
topology: tpu7x:2x2x1
jax: 0.10.0
libtpu: 0.0.40
codegen_flags: <defaults>
</compile_context>

<pallas_src>
import functools

import jax
import jax.numpy as jnp
from jax import lax
from jax.experimental import pallas as pl
from jax.experimental.pallas import tpu as pltpu

EPS = 1e-6  # GeM eps


def _int_pow(x, n):
    """x ** n for a small static positive integer n (square-and-multiply, VPU only)."""
    result = None
    base = x
    while n > 0:
        if n & 1:
            result = base if result is None else result * base
        n >>= 1
        if n:
            base = base * base
    return result


def gem_linear_kernel(scal_ref, x_ref, w_ref, b_ref, o_ref, lacc_ref, *, int_p):
    # scal_ref: (4,) SMEM f32            -> [p, 1/p, 1/HW_true, n_pad * eps**p]
    # x_ref:    (B_blk, C, HW_blk) VMEM bf16 feature slab (HW zero-padded to 128x)
    # w_ref:    (C, NCP)           VMEM f32 weight (transposed, cols zero-padded)
    # b_ref:    (1, NCP)           VMEM f32 bias (zero-padded)
    # o_ref:    (B_blk, NCP)       VMEM f32 logits (lane-dense)
    # lacc_ref: (B_blk, C, 128)    f32 lane-resident partial sums of clamp(x)^p
    hw_i = pl.program_id(1)

    @pl.when(hw_i == 0)
    def _init():
        lacc_ref[...] = jnp.zeros_like(lacc_ref)

    hw_blk = x_ref.shape[-1]
    n_lt = hw_blk // 128                     # static lane-tile count in this slab

    if int_p is None:
        p = scal_ref[0]                      # read SMEM once, outside the loop

    # Stream the slab one 128-lane tile at a time: load -> upcast -> clamp ->
    # pow -> VPU-accumulate into the lane-resident scratch.  No cross-lane
    # work happens here; the single 128->1 reduce is deferred to finalize.
    for j in range(n_lt):
        xj = x_ref[:, :, j * 128:(j + 1) * 128].astype(jnp.float32)
        xcj = jnp.maximum(xj, EPS)                       # clamp(min=eps)
        if int_p is None:
            xpj = jnp.exp(p * jnp.log(xcj))              # xc ** p (EUP fallback)
        else:
            xpj = _int_pow(xcj, int_p)                   # VPU-only integer p
        lacc_ref[...] += xpj

    @pl.when(hw_i == pl.num_programs(1) - 1)
    def _finalize():
        inv_p = scal_ref[1]
        inv_hw = scal_ref[2]
        pad_corr = scal_ref[3]                           # n_pad * eps**p
        acc = jnp.sum(lacc_ref[...], axis=-1)            # one 128->1 lane reduce
        pooled = (acc - pad_corr) * inv_hw               # exact mean over true H*W
        gem = jnp.exp(jnp.log(pooled) * inv_p)           # pooled ** (1/p), pooled > 0
        o_ref[...] = (
            jnp.dot(gem, w_ref[...], preferred_element_type=jnp.float32)
            + b_ref[...]
        )


def _static_int_p(p):
    """Return int(p) if p is a concrete integer-valued scalar, else None.

    NOTE: if gem_p is a tracer (e.g. the whole forward is jitted with p as a
    traced array) this returns None and the kernel falls back to the exp/log
    (EUP) path on the full feature tensor -- pass p statically for speed.
    """
    try:
        v = float(jnp.asarray(p).reshape(()))   # raises under tracing
    except Exception:
        return None
    r = int(round(v))
    if abs(v - r) < 1e-12 and 1 <= r <= 8:
        return r
    return None


def _detect_vmem_capacity():
    try:
        return int(pltpu.get_tpu_info().vmem_capacity_bytes)
    except Exception:
        return 64 * 1024 * 1024                 # conservative (v7x-sized) default


def _choose_batch_block(b_pad, c, itemsize, x_budget, scratch_budget):
    if b_pad <= 8:
        return b_pad                            # full extent is a legal block
    cap = 64
    if b_pad >= 16:
        cap = min(cap, b_pad // 2)              # keep >= 2 batch tiles (megacore)
    # 128-lane floor of the feature block must fit the per-block budget.
    cap = min(cap, max(8, x_budget // max(1, c * 128 * itemsize)))
    # Lane-resident scratch (B_blk, C, 128) f32 must stay modest.
    cap = min(cap, max(8, scratch_budget // max(1, c * 128 * 4)))
    best, m = 8, 8
    while m <= min(b_pad, cap):
        if b_pad % m == 0:
            best = m
        m += 8
    return best


def _choose_hw_block(hw_pad, b_blk, c, itemsize, x_budget, max_lanes):
    # Largest multiple-of-128 divisor of hw_pad within the per-block VMEM budget.
    per_lane = max(1, b_blk * c * itemsize)
    lane_cap = max(128, min(max_lanes, x_budget // per_lane))
    lane_cap = (lane_cap // 128) * 128
    blk, cand = 128, 256
    while cand <= min(hw_pad, lane_cap):
        if hw_pad % cand == 0:
            blk = cand
        cand += 128
    return min(blk, hw_pad)


def isic_head(features_nchw, p_scalar, lin_w, lin_b, *,
              feature_dtype=jnp.bfloat16):
    """GeM pooling + Linear head, fused in a single tiled Pallas call."""
    B, C, H, W = features_nchw.shape
    HW = H * W
    NC = lin_w.shape[0]                          # torch nn.Linear weight is (out, in)
    NCP = ((NC + 127) // 128) * 128              # lane-dense output width

    # Lane/sublane friendly padding (exactness restored in the kernel finalize).
    HW_pad = ((HW + 127) // 128) * 128
    B_pad = B if B <= 8 else ((B + 7) // 8) * 8
    n_hw_pad = HW_pad - HW

    x = features_nchw.reshape(B, C, HW).astype(feature_dtype)
    if B_pad != B or HW_pad != HW:
        x = jnp.pad(x, ((0, B_pad - B), (0, 0), (0, n_hw_pad)))

    w = jnp.zeros((C, NCP), jnp.float32).at[:, :NC].set(lin_w.T.astype(jnp.float32))
    b = jnp.zeros((1, NCP), jnp.float32).at[:, :NC].set(
        lin_b.reshape(1, NC).astype(jnp.float32))

    p32 = jnp.asarray(p_scalar, jnp.float32).reshape(())
    pad_corr = jnp.float32(n_hw_pad) * jnp.power(jnp.float32(EPS), p32)
    scal = jnp.stack([p32, 1.0 / p32, jnp.float32(1.0 / HW), pad_corr])  # (4,) SMEM

    int_p = _static_int_p(p_scalar)
    itemsize = jnp.dtype(feature_dtype).itemsize

    # Per-generation block sizing from detected VMEM capacity.
    vmem_cap = _detect_vmem_capacity()
    if vmem_cap >= (100 << 20):                  # v5e / v6e: 128 MiB VMEM
        x_budget, max_lanes = 12 << 20, 2048
    else:                                        # v7x-sized (64 MiB): stay small
        x_budget, max_lanes = 5 << 20, 1024
    scratch_budget = 6 << 20

    b_blk = _choose_batch_block(B_pad, C, itemsize, x_budget, scratch_budget)
    hw_blk = _choose_hw_block(HW_pad, b_blk, C, itemsize, x_budget, max_lanes)
    assert hw_blk % 128 == 0 and HW_pad % hw_blk == 0 and B_pad % b_blk == 0
    grid = (B_pad // b_blk, HW_pad // hw_blk)

    # Explicit VMEM limit: actual footprint + margin, capped at 3/4 of physical.
    x_block_bytes = b_blk * C * hw_blk * itemsize
    lacc_bytes = b_blk * C * 128 * 4
    needed = (2 * x_block_bytes + 2 * C * NCP * 4 + 2 * NCP * 4
              + 2 * b_blk * NCP * 4 + lacc_bytes + (4 << 20))
    vmem_limit = int(min(max(needed, 8 << 20), min((vmem_cap * 3) // 4, 96 << 20)))

    n_elem = B_pad * C * HW_pad
    if int_p is None:
        flops = 4 * n_elem + 2 * B_pad * C * NCP
        transcendentals = 2 * n_elem + 2 * B_pad * C
    else:
        flops = (int_p + 2) * n_elem + 2 * B_pad * C * NCP
        transcendentals = 2 * B_pad * C
    bytes_accessed = (x.size * itemsize + C * NCP * 4 + NCP * 4
                      + B_pad * NCP * 4 + scal.size * 4)

    kernel = functools.partial(gem_linear_kernel, int_p=int_p)

    out = pl.pallas_call(
        kernel,
        out_shape=jax.ShapeDtypeStruct((B_pad, NCP), jnp.float32),
        grid_spec=pltpu.PrefetchScalarGridSpec(
            num_scalar_prefetch=0,
            grid=grid,
            in_specs=[
                pl.BlockSpec(memory_space=pltpu.MemorySpace.SMEM),          # scalars
                pl.BlockSpec((b_blk, C, hw_blk), lambda bi, hi: (bi, 0, hi)),
                pl.BlockSpec((C, NCP), lambda bi, hi: (0, 0)),              # resident
                pl.BlockSpec((1, NCP), lambda bi, hi: (0, 0)),              # resident
            ],
            out_specs=pl.BlockSpec((b_blk, NCP), lambda bi, hi: (bi, 0)),
            scratch_shapes=[pltpu.VMEM((b_blk, C, 128), jnp.float32)],
        ),
        compiler_params=pltpu.CompilerParams(
            dimension_semantics=("parallel", "arbitrary"),
            vmem_limit_bytes=vmem_limit,
        ),
        cost_estimate=pl.CostEstimate(
            flops=flops, transcendentals=transcendentals,
            bytes_accessed=bytes_accessed),
    )(scal, x, w, b)

    return out[:B, :NC]


def synthetic_encoder(images, conv_w, conv_b):
    # TODO(synk): timm.create_model(encoder_name) backbone is not translatable
    # without its checkpoint; stand-in = deterministic 3x3 stride-2 conv + ReLU.
    y = lax.conv_general_dilated(
        images, conv_w, window_strides=(2, 2), padding="SAME",
        dimension_numbers=("NCHW", "OIHW", "NCHW"))
    y = y + conv_b[None, :, None, None]
    return jax.nn.relu(y)


def isic_base_model_forward(images, params):
    features = synthetic_encoder(images, params["conv_w"], params["conv_b"])
    malignant = isic_head(features, params["gem_p"], params["lin_w"], params["lin_b"])
    return {"malignant": malignant}


def _gem_linear_reference(features_nchw, p, lin_w, lin_b):
    """Pure-JAX reference on the same bf16-quantized feature transport."""
    xq = features_nchw.astype(jnp.bfloat16).astype(jnp.float32)
    xc = jnp.maximum(xq, EPS)
    pooled = jnp.mean(xc ** p, axis=(2, 3)) ** (1.0 / p)
    return pooled @ lin_w.T + lin_b


if __name__ == "__main__":
    key = jax.random.PRNGKey(0)
    k_img, k_cw, k_cb, k_lw, k_lb, k_f2 = jax.random.split(key, 6)

    B, Cin, S = 2, 3, 64          # images NCHW -> feature map (B, 32, 32, 32)
    Cfeat, NC = 32, 1             # encoder feature channels, num_classes=1

    images = jax.random.normal(k_img, (B, Cin, S, S), jnp.float32)

    params = {
        "conv_w": 0.1 * jax.random.normal(k_cw, (Cfeat, Cin, 3, 3), jnp.float32),
        "conv_b": 0.1 * jax.random.normal(k_cb, (Cfeat,), jnp.float32),
        "gem_p": jnp.array(3.0, jnp.float32),                        # GeM p init = 3
        "lin_w": 0.1 * jax.random.normal(k_lw, (NC, Cfeat), jnp.float32),
        "lin_b": 0.1 * jax.random.normal(k_lb, (NC,), jnp.float32),
    }

    # --- full forward: encoder stand-in + fused GeM/Linear head --------------
    out = isic_base_model_forward(images, params)
    malignant = jax.block_until_ready(out["malignant"])

    feats = synthetic_encoder(images, params["conv_w"], params["conv_b"])
    ref = _gem_linear_reference(feats, params["gem_p"], params["lin_w"], params["lin_b"])

    assert malignant.shape == (B, NC)
    assert jnp.allclose(malignant, ref, rtol=1e-4, atol=1e-4), "mismatch vs reference"

    # --- extra check: realistic backbone-shaped map (HW=7x7=49, not 128-mult) ---
    feats2 = jax.random.normal(k_f2, (B, Cfeat, 7, 7), jnp.float32)
    out2 = jax.block_until_ready(
        isic_head(feats2, params["gem_p"], params["lin_w"], params["lin_b"]))
    ref2 = _gem_linear_reference(feats2, params["gem_p"], params["lin_w"], params["lin_b"])
    assert out2.shape == (B, NC)
    assert jnp.allclose(out2, ref2, rtol=1e-4, atol=1e-4), "mismatch vs reference (7x7)"

    print("KERNEL_OK")
</pallas_src>

<mosaic_0001>
module attributes {stable_mosaic.version = 11 : i64} {
  func.func @gem_linear_kernel(%arg0: i32, %arg1: i32, %arg2: memref<4xf32, #tpu.memory_space<smem>>, %arg3: memref<2x32x1024xbf16, #tpu.memory_space<vmem>>, %arg4: memref<32x128xf32, #tpu.memory_space<vmem>>, %arg5: memref<1x128xf32, #tpu.memory_space<vmem>>, %arg6: memref<2x128xf32, #tpu.memory_space<vmem>>, %arg7: memref<2x32x128xf32, #tpu.memory_space<vmem>>) attributes {dimension_semantics = [#tpu.dimension_semantics<parallel>, #tpu.dimension_semantics<arbitrary>], iteration_bounds = array<i64: 1, 1>, scalar_prefetch = 0 : i64, scratch_operands = 1 : i64, tpu.core_type = #tpu.core_type<tc>, window_params = [{transform_indices = @transform_0, window_bounds = array<i64: 4>}, {transform_indices = @transform_1, window_bounds = array<i64: 2, 32, 1024>}, {pipeline_mode = #tpu.pipeline_mode<synchronous>, transform_indices = @transform_2, window_bounds = array<i64: 32, 128>}, {pipeline_mode = #tpu.pipeline_mode<synchronous>, transform_indices = @transform_3, window_bounds = array<i64: 1, 128>}, {transform_indices = @transform_4, window_bounds = array<i64: 2, 128>}]} {
    %c0_i32 = arith.constant 0 : i32
    %0 = arith.cmpi eq, %arg1, %c0_i32 : i32
    %1 = arith.extui %0 : i1 to i32
    %c0_i32_0 = arith.constant 0 : i32
    %2 = arith.cmpi ne, %1, %c0_i32_0 : i32
    scf.if %2 {
      %cst_74 = arith.constant 0.000000e+00 : f32
      %78 = vector.broadcast %cst_74 : f32 to vector<2x32x128xf32>
      %c0_75 = arith.constant 0 : index
      %c0_76 = arith.constant 0 : index
      %c0_77 = arith.constant 0 : index
      %79 = vector.load %arg7[%c0_75, %c0_76, %c0_77] : memref<2x32x128xf32, #tpu.memory_space<vmem>>, vector<2x32x128xf32>
      tpu.vector_store %arg7[%c0_75, %c0_76, %c0_77], %78 {strides = array<i32>} : memref<2x32x128xf32, #tpu.memory_space<vmem>>, vector<2x32x128xf32>,
    } else {
    }
    %c0 = arith.constant 0 : index
    %c0_1 = arith.constant 0 : index
    %c0_2 = arith.constant 0 : index
    %3 = vector.load %arg3[%c0, %c0_1, %c0_2] : memref<2x32x1024xbf16, #tpu.memory_space<vmem>>, vector<2x32x128xbf16>
    %4 = arith.extf %3 : vector<2x32x128xbf16> to vector<2x32x128xf32>
    %cst = arith.constant 9.99999997E-7 : f32
    %5 = vector.broadcast %cst : f32 to vector<2x32x128xf32>
    %6 = arith.maximumf %4, %5 : vector<2x32x128xf32>
    %7 = arith.mulf %6, %6 : vector<2x32x128xf32>
    %8 = arith.mulf %6, %7 : vector<2x32x128xf32>
    %c0_3 = arith.constant 0 : index
    %c0_4 = arith.constant 0 : index
    %c0_5 = arith.constant 0 : index
    %9 = vector.load %arg7[%c0_3, %c0_4, %c0_5] : memref<2x32x128xf32, #tpu.memory_space<vmem>>, vector<2x32x128xf32>
    %10 = arith.addf %9, %8 : vector<2x32x128xf32>
    %c0_6 = arith.constant 0 : index
    %c0_7 = arith.constant 0 : index
    %c0_8 = arith.constant 0 : index
    %11 = vector.load %arg7[%c0_6, %c0_7, %c0_8] : memref<2x32x128xf32, #tpu.memory_space<vmem>>, vector<2x32x128xf32>
    tpu.vector_store %arg7[%c0_6, %c0_7, %c0_8], %10 {strides = array<i32>} : memref<2x32x128xf32, #tpu.memory_space<vmem>>, vector<2x32x128xf32>,
    %c0_9 = arith.constant 0 : index
    %c0_10 = arith.constant 0 : index
    %c128 = arith.constant 128 : index
    %12 = vector.load %arg3[%c0_9, %c0_10, %c128] : memref<2x32x1024xbf16, #tpu.memory_space<vmem>>, vector<2x32x128xbf16>
    %13 = arith.extf %12 : vector<2x32x128xbf16> to vector<2x32x128xf32>
    %cst_11 = arith.constant 9.99999997E-7 : f32
    %14 = vector.broadcast %cst_11 : f32 to vector<2x32x128xf32>
    %15 = arith.maximumf %13, %14 : vector<2x32x128xf32>
    %16 = arith.mulf %15, %15 : vector<2x32x128xf32>
    %17 = arith.mulf %15, %16 : vector<2x32x128xf32>
    %c0_12 = arith.constant 0 : index
    %c0_13 = arith.constant 0 : index
    %c0_14 = arith.constant 0 : index
    %18 = vector.load %arg7[%c0_12, %c0_13, %c0_14] : memref<2x32x128xf32, #tpu.memory_space<vmem>>, vector<2x32x128xf32>
    %19 = arith.addf %18, %17 : vector<2x32x128xf32>
    %c0_15 = arith.constant 0 : index
    %c0_16 = arith.constant 0 : index
    %c0_17 = arith.constant 0 : index
    %20 = vector.load %arg7[%c0_15, %c0_16, %c0_17] : memref<2x32x128xf32, #tpu.memory_space<vmem>>, vector<2x32x128xf32>
    tpu.vector_store %arg7[%c0_15, %c0_16, %c0_17], %19 {strides = array<i32>} : memref<2x32x128xf32, #tpu.memory_space<vmem>>, vector<2x32x128xf32>,
    %c0_18 = arith.constant 0 : index
    %c0_19 = arith.constant 0 : index
    %c256 = arith.constant 256 : index
    %21 = vector.load %arg3[%c0_18, %c0_19, %c256] : memref<2x32x1024xbf16, #tpu.memory_space<vmem>>, vector<2x32x128xbf16>
    %22 = arith.extf %21 : vector<2x32x128xbf16> to vector<2x32x128xf32>
    %cst_20 = arith.constant 9.99999997E-7 : f32
    %23 = vector.broadcast %cst_20 : f32 to vector<2x32x128xf32>
    %24 = arith.maximumf %22, %23 : vector<2x32x128xf32>
    %25 = arith.mulf %24, %24 : vector<2x32x128xf32>
    %26 = arith.mulf %24, %25 : vector<2x32x128xf32>
    %c0_21 = arith.constant 0 : index
    %c0_22 = arith.constant 0 : index
    %c0_23 = arith.constant 0 : index
    %27 = vector.load %arg7[%c0_21, %c0_22, %c0_23] : memref<2x32x128xf32, #tpu.memory_space<vmem>>, vector<2x32x128xf32>
    %28 = arith.addf %27, %26 : vector<2x32x128xf32>
    %c0_24 = arith.constant 0 : index
    %c0_25 = arith.constant 0 : index
    %c0_26 = arith.constant 0 : index
    %29 = vector.load %arg7[%c0_24, %c0_25, %c0_26] : memref<2x32x128xf32, #tpu.memory_space<vmem>>, vector<2x32x128xf32>
    tpu.vector_store %arg7[%c0_24, %c0_25, %c0_26], %28 {strides = array<i32>} : memref<2x32x128xf32, #tpu.memory_space<vmem>>, vector<2x32x128xf32>,
    %c0_27 = arith.constant 0 : index
    %c0_28 = arith.constant 0 : index
    %c384 = arith.constant 384 : index
    %30 = vector.load %arg3[%c0_27, %c0_28, %c384] : memref<2x32x1024xbf16, #tpu.memory_space<vmem>>, vector<2x32x128xbf16>
    %31 = arith.extf %30 : vector<2x32x128xbf16> to vector<2x32x128xf32>
    %cst_29 = arith.constant 9.99999997E-7 : f32
    %32 = vector.broadcast %cst_29 : f32 to vector<2x32x128xf32>
    %33 = arith.maximumf %31, %32 : vector<2x32x128xf32>
    %34 = arith.mulf %33, %33 : vector<2x32x128xf32>
    %35 = arith.mulf %33, %34 : vector<2x32x128xf32>
    %c0_30 = arith.constant 0 : index
    %c0_31 = arith.constant 0 : index
    %c0_32 = arith.constant 0 : index
    %36 = vector.load %arg7[%c0_30, %c0_31, %c0_32] : memref<2x32x128xf32, #tpu.memory_space<vmem>>, vector<2x32x128xf32>
    %37 = arith.addf %36, %35 : vector<2x32x128xf32>
    %c0_33 = arith.constant 0 : index
    %c0_34 = arith.constant 0 : index
    %c0_35 = arith.constant 0 : index
    %38 = vector.load %arg7[%c0_33, %c0_34, %c0_35] : memref<2x32x128xf32, #tpu.memory_space<vmem>>, vector<2x32x128xf32>
    tpu.vector_store %arg7[%c0_33, %c0_34, %c0_35], %37 {strides = array<i32>} : memref<2x32x128xf32, #tpu.memory_space<vmem>>, vector<2x32x128xf32>,
    %c0_36 = arith.constant 0 : index
    %c0_37 = arith.constant 0 : index
    %c512 = arith.constant 512 : index
    %39 = vector.load %arg3[%c0_36, %c0_37, %c512] : memref<2x32x1024xbf16, #tpu.memory_space<vmem>>, vector<2x32x128xbf16>
    %40 = arith.extf %39 : vector<2x32x128xbf16> to vector<2x32x128xf32>
    %cst_38 = arith.constant 9.99999997E-7 : f32
    %41 = vector.broadcast %cst_38 : f32 to vector<2x32x128xf32>
    %42 = arith.maximumf %40, %41 : vector<2x32x128xf32>
    %43 = arith.mulf %42, %42 : vector<2x32x128xf32>
    %44 = arith.mulf %42, %43 : vector<2x32x128xf32>
    %c0_39 = arith.constant 0 : index
    %c0_40 = arith.constant 0 : index
    %c0_41 = arith.constant 0 : index
    %45 = vector.load %arg7[%c0_39, %c0_40, %c0_41] : memref<2x32x128xf32, #tpu.memory_space<vmem>>, vector<2x32x128xf32>
    %46 = arith.addf %45, %44 : vector<2x32x128xf32>
    %c0_42 = arith.constant 0 : index
    %c0_43 = arith.constant 0 : index
    %c0_44 = arith.constant 0 : index
    %47 = vector.load %arg7[%c0_42, %c0_43, %c0_44] : memref<2x32x128xf32, #tpu.memory_space<vmem>>, vector<2x32x128xf32>
    tpu.vector_store %arg7[%c0_42, %c0_43, %c0_44], %46 {strides = array<i32>} : memref<2x32x128xf32, #tpu.memory_space<vmem>>, vector<2x32x128xf32>,
    %c0_45 = arith.constant 0 : index
    %c0_46 = arith.constant 0 : index
    %c640 = arith.constant 640 : index
    %48 = vector.load %arg3[%c0_45, %c0_46, %c640] : memref<2x32x1024xbf16, #tpu.memory_space<vmem>>, vector<2x32x128xbf16>
    %49 = arith.extf %48 : vector<2x32x128xbf16> to vector<2x32x128xf32>
    %cst_47 = arith.constant 9.99999997E-7 : f32
    %50 = vector.broadcast %cst_47 : f32 to vector<2x32x128xf32>
    %51 = arith.maximumf %49, %50 : vector<2x32x128xf32>
    %52 = arith.mulf %51, %51 : vector<2x32x128xf32>
    %53 = arith.mulf %51, %52 : vector<2x32x128xf32>
    %c0_48 = arith.constant 0 : index
    %c0_49 = arith.constant 0 : index
    %c0_50 = arith.constant 0 : index
    %54 = vector.load %arg7[%c0_48, %c0_49, %c0_50] : memref<2x32x128xf32, #tpu.memory_space<vmem>>, vector<2x32x128xf32>
    %55 = arith.addf %54, %53 : vector<2x32x128xf32>
    %c0_51 = arith.constant 0 : index
    %c0_52 = arith.constant 0 : index
    %c0_53 = arith.constant 0 : index
    %56 = vector.load %arg7[%c0_51, %c0_52, %c0_53] : memref<2x32x128xf32, #tpu.memory_space<vmem>>, vector<2x32x128xf32>
    tpu.vector_store %arg7[%c0_51, %c0_52, %c0_53], %55 {strides = array<i32>} : memref<2x32x128xf32, #tpu.memory_space<vmem>>, vector<2x32x128xf32>,
    %c0_54 = arith.constant 0 : index
    %c0_55 = arith.constant 0 : index
    %c768 = arith.constant 768 : index
    %57 = vector.load %arg3[%c0_54, %c0_55, %c768] : memref<2x32x1024xbf16, #tpu.memory_space<vmem>>, vector<2x32x128xbf16>
    %58 = arith.extf %57 : vector<2x32x128xbf16> to vector<2x32x128xf32>
    %cst_56 = arith.constant 9.99999997E-7 : f32
    %59 = vector.broadcast %cst_56 : f32 to vector<2x32x128xf32>
    %60 = arith.maximumf %58, %59 : vector<2x32x128xf32>
    %61 = arith.mulf %60, %60 : vector<2x32x128xf32>
    %62 = arith.mulf %60, %61 : vector<2x32x128xf32>
    %c0_57 = arith.constant 0 : index
    %c0_58 = arith.constant 0 : index
    %c0_59 = arith.constant 0 : index
    %63 = vector.load %arg7[%c0_57, %c0_58, %c0_59] : memref<2x32x128xf32, #tpu.memory_space<vmem>>, vector<2x32x128xf32>
    %64 = arith.addf %63, %62 : vector<2x32x128xf32>
    %c0_60 = arith.constant 0 : index
    %c0_61 = arith.constant 0 : index
    %c0_62 = arith.constant 0 : index
    %65 = vector.load %arg7[%c0_60, %c0_61, %c0_62] : memref<2x32x128xf32, #tpu.memory_space<vmem>>, vector<2x32x128xf32>
    tpu.vector_store %arg7[%c0_60, %c0_61, %c0_62], %64 {strides = array<i32>} : memref<2x32x128xf32, #tpu.memory_space<vmem>>, vector<2x32x128xf32>,
    %c0_63 = arith.constant 0 : index
    %c0_64 = arith.constant 0 : index
    %c896 = arith.constant 896 : index
    %66 = vector.load %arg3[%c0_63, %c0_64, %c896] : memref<2x32x1024xbf16, #tpu.memory_space<vmem>>, vector<2x32x128xbf16>
    %67 = arith.extf %66 : vector<2x32x128xbf16> to vector<2x32x128xf32>
    %cst_65 = arith.constant 9.99999997E-7 : f32
    %68 = vector.broadcast %cst_65 : f32 to vector<2x32x128xf32>
    %69 = arith.maximumf %67, %68 : vector<2x32x128xf32>
    %70 = arith.mulf %69, %69 : vector<2x32x128xf32>
    %71 = arith.mulf %69, %70 : vector<2x32x128xf32>
    %c0_66 = arith.constant 0 : index
    %c0_67 = arith.constant 0 : index
    %c0_68 = arith.constant 0 : index
    %72 = vector.load %arg7[%c0_66, %c0_67, %c0_68] : memref<2x32x128xf32, #tpu.memory_space<vmem>>, vector<2x32x128xf32>
    %73 = arith.addf %72, %71 : vector<2x32x128xf32>
    %c0_69 = arith.constant 0 : index
    %c0_70 = arith.constant 0 : index
    %c0_71 = arith.constant 0 : index
    %74 = vector.load %arg7[%c0_69, %c0_70, %c0_71] : memref<2x32x128xf32, #tpu.memory_space<vmem>>, vector<2x32x128xf32>
    tpu.vector_store %arg7[%c0_69, %c0_70, %c0_71], %73 {strides = array<i32>} : memref<2x32x128xf32, #tpu.memory_space<vmem>>, vector<2x32x128xf32>,
    %c0_i32_72 = arith.constant 0 : i32
    %75 = arith.cmpi eq, %arg1, %c0_i32_72 : i32
    %76 = arith.extui %75 : i1 to i32
    %c0_i32_73 = arith.constant 0 : i32
    %77 = arith.cmpi ne, %76, %c0_i32_73 : i32
    scf.if %77 {
      %c1 = arith.constant 1 : index
      %78 = memref.load %arg2[%c1] : memref<4xf32, #tpu.memory_space<smem>>
      %c2 = arith.constant 2 : index
      %79 = memref.load %arg2[%c2] : memref<4xf32, #tpu.memory_space<smem>>
      %c3 = arith.constant 3 : index
      %80 = memref.load %arg2[%c3] : memref<4xf32, #tpu.memory_space<smem>>
      %c0_74 = arith.constant 0 : index
      %c0_75 = arith.constant 0 : index
      %c0_76 = arith.constant 0 : index
      %81 = vector.load %arg7[%c0_74, %c0_75, %c0_76] : memref<2x32x128xf32, #tpu.memory_space<vmem>>, vector<2x32x128xf32>
      %cst_77 = arith.constant dense<0.000000e+00> : vector<2x32xf32>
      %82 = vector.multi_reduction <add>, %81, %cst_77 [2] : vector<2x32x128xf32> to vector<2x32xf32>
      %83 = vector.broadcast %80 : f32 to vector<2x32xf32>
      %84 = arith.subf %82, %83 : vector<2x32xf32>
      %85 = vector.broadcast %79 : f32 to vector<2x32xf32>
      %86 = arith.mulf %84, %85 : vector<2x32xf32>
      %87 = math.log %86 : vector<2x32xf32>
      %88 = vector.broadcast %78 : f32 to vector<2x32xf32>
      %89 = arith.mulf %87, %88 : vector<2x32xf32>
      %90 = math.exp %89 : vector<2x32xf32>
      %c0_78 = arith.constant 0 : index
      %c0_79 = arith.constant 0 : index
      %91 = vector.load %arg4[%c0_78, %c0_79] : memref<32x128xf32, #tpu.memory_space<vmem>>, vector<32x128xf32>
      %cst_80 = arith.constant dense<0.000000e+00> : vector<2x128xf32>
      %92 = tpu.matmul %90, %91, %cst_80 {dimension_numbers = #tpu.dot_dimension_numbers<[1], [0], [0], [1], [0, 0, 1, 1], [], []>} : vector<2x32xf32>, vector<32x128xf32>, vector<2x128xf32> -> vector<2x128xf32>
      %c0_81 = arith.constant 0 : index
      %c0_82 = arith.constant 0 : index
      %93 = vector.load %arg5[%c0_81, %c0_82] : memref<1x128xf32, #tpu.memory_space<vmem>>, vector<1x128xf32>
      %94 = vector.broadcast %93 : vector<1x128xf32> to vector<2x128xf32>
      %95 = arith.addf %92, %94 : vector<2x128xf32>
      %c0_83 = arith.constant 0 : index
      %c0_84 = arith.constant 0 : index
      %96 = vector.load %arg6[%c0_83, %c0_84] : memref<2x128xf32, #tpu.memory_space<vmem>>, vector<2x128xf32>
      tpu.vector_store %arg6[%c0_83, %c0_84], %95 {strides = array<i32>} : memref<2x128xf32, #tpu.memory_space<vmem>>, vector<2x128xf32>,
    } else {
    }
    return
  }
  func.func @transform_0(%arg0: i32, %arg1: i32) -> i32 {
    %c0_i32 = arith.constant 0 : i32
    %c0_i32_0 = arith.constant 0 : i32
    return %c0_i32 : i32
  }
  func.func @transform_1(%arg0: i32, %arg1: i32) -> (i32, i32, i32) {
    %c0_i32 = arith.constant 0 : i32
    %c0_i32_0 = arith.constant 0 : i32
    return %arg0, %c0_i32, %arg1 : i32, i32, i32
  }
  func.func @transform_2(%arg0: i32, %arg1: i32) -> (i32, i32) {
    %c0_i32 = arith.constant 0 : i32
    %c0_i32_0 = arith.constant 0 : i32
    %c0_i32_1 = arith.constant 0 : i32
    return %c0_i32, %c0_i32_0 : i32, i32
  }
  func.func @transform_3(%arg0: i32, %arg1: i32) -> (i32, i32) {
    %c0_i32 = arith.constant 0 : i32
    %c0_i32_0 = arith.constant 0 : i32
    %c0_i32_1 = arith.constant 0 : i32
    return %c0_i32, %c0_i32_0 : i32, i32
  }
  func.func @transform_4(%arg0: i32, %arg1: i32) -> (i32, i32) {
    %c0_i32 = arith.constant 0 : i32
    %c0_i32_0 = arith.constant 0 : i32
    return %arg0, %c0_i32 : i32, i32
  }
}

</mosaic_0001>

<llo_original>
// kernel: tpu_custom_call.1
$region0: #{tpu_custom_call.1}
  #allocation0 [shape = 'u32[]', space=smem, size = 0x4, offset = 0x4, fixed_abs, tag = 'smem constant byte address 0x4 - core index']
  #allocation1 [shape = 'u32[144,128]{1,0:T(1,128)}', space=vmem, size = 0x12000, scoped, tag = 'internal scratch']
  #allocation2 [shape = 'f32[2,32,128]{2,1,0:T(8,128)}', space=vmem, size = 0x8000, scoped, tag = 'scratch operand']
  %s0 = inlined_call_operand.hbm [shape: f32[4], index: 0, kind: input, shape index: {}]
  %s1 = inlined_call_operand.hbm [shape: bf16[2,32,1024], index: 1, kind: input, shape index: {}]
  %s2 = inlined_call_operand.hbm [shape: f32[32,128], index: 2, kind: input, shape index: {}]
  %s3 = inlined_call_operand.vmem [shape: f32[1,128], index: 3, kind: input, shape index: {}]
  %s4 = inlined_call_operand.hbm [shape: f32[2,128], index: 4, kind: output, shape index: {}]
  %s5 = sld [smem:[#allocation0]]
  $region46: #{tpu_custom_call.1} parent=0
    _
  %s7 = ssub.s32 1, %s5
  %s8 = scalar_select 0, %s7, %s5
  $region1: #{tpu_custom_call.1} parent=0
    #allocation3 [shape = 'u8[512]{0}', space=smem, size = 0x200, scoped, tag = 'input window, operand 0, single buffered']
    #allocation4 [shape = 's32[1]{0}', space=sflag, size = 0x4, scoped, tag = 'scoped memory for tpu_custom_call.1']
    #allocation5 [shape = 's32[1]{0}', space=sflag, size = 0x4, scoped, tag = 'scoped memory for tpu_custom_call.1']
    #allocation6 [shape = 's32[1]{0}', space=sflag, size = 0x4, scoped, tag = 'scoped memory for tpu_custom_call.1']
    #allocation7 [shape = 'u8[131072]{0}', space=vmem, size = 0x20000, scoped, tag = 'input window, operand 1, single buffered']
    #allocation8 [shape = 'u8[16384]{0}', space=vmem, size = 0x4000, scoped, tag = 'input window, operand 2, single buffered']
    #allocation9 [shape = 's32[1]{0}', space=sflag, size = 0x4, scoped, tag = 'scoped memory for tpu_custom_call.1']
    #allocation10 [shape = 'u8[1024]{0}', space=vmem, size = 0x400, scoped, tag = 'output window, operand 0, single buffered']
    %9 = vsyncpa [#allocation6], 0
    %10 = vsyncpa [#allocation4], 0
    %11 = vsyncpa [#allocation9], 0
    %12 = vsyncpa [#allocation5], 0
    // Predicated region
    $region2: #{tpu_custom_call.1} parent=1 // pred_check
      _
    $region3: #{tpu_custom_call.1} parent=1 // pred_check_branch
      %14 = sbr.rel (0) target = $region5
    $region4: #{tpu_custom_call.1} parent=1 // pred_region
      %s16 = ssub.s32 16, 16
      %17 = vsyncadd [#allocation6], %s16
      %20 = dma.hbm_to_smem %s0, 16, [#allocation3], [#allocation6]
    $region5: #{tpu_custom_call.1} parent=1 // pred_fallthru
      _
    // Predicated region
    $region6: #{tpu_custom_call.1} parent=1 // pred_check
      _
    $region7: #{tpu_custom_call.1} parent=1 // pred_check_branch
      %22 = sbr.rel (0) target = $region9
    $region8: #{tpu_custom_call.1} parent=1 // pred_region
      %s24 = ssub.s32 4096, 4096
      %25 = vsyncadd [#allocation4], %s24
      %s26 = sshll.u32 [#allocation7], 4
      %s27 = int_to_ptr.vmem [resolvable:$true] %s26
      %32 = dma.hbm_to_vmem [thread:$0]  %s1, 4096, %s27, [#allocation4], 512, 512, 32
    $region9: #{tpu_custom_call.1} parent=1 // pred_fallthru
      _
    // Predicated region
    $region10: #{tpu_custom_call.1} parent=1 // pred_check
      _
    $region11: #{tpu_custom_call.1} parent=1 // pred_check_branch
      %34 = sbr.rel (0) target = $region13
    $region12: #{tpu_custom_call.1} parent=1 // pred_region
      %s36 = ssub.s32 512, 512
      %37 = vsyncadd [#allocation9], %s36
      %s38 = sshll.u32 [#allocation8], 4
      %s39 = int_to_ptr.vmem [resolvable:$true] %s38
      %44 = dma.hbm_to_vmem [thread:$0]  %s2, 512, %s39, [#allocation9], 128, 128, 8
    $region13: #{tpu_custom_call.1} parent=1 // pred_fallthru
      _
    // Predicated region
    $region14: #{tpu_custom_call.1} parent=1 // pred_check
      _
    $region15: #{tpu_custom_call.1} parent=1 // pred_check_branch
      %46 = sbr.rel (0) target = $region17
    $region16: #{tpu_custom_call.1} parent=1 // pred_region
      _
    $region17: #{tpu_custom_call.1} parent=1 // pred_fallthru
      _
    // Predicated region
    $region18: #{tpu_custom_call.1} parent=1 // pred_check
      _
    $region19: #{tpu_custom_call.1} parent=1 // pred_check_branch
      %48 = sbr.rel (0) target = $region21
    $region20: #{tpu_custom_call.1} parent=1 // pred_region
      %49 = dma.done [#allocation6], 16
    $region21: #{tpu_custom_call.1} parent=1 // pred_fallthru
      _
    // Predicated region
    $region22: #{tpu_custom_call.1} parent=1 // pred_check
      _
    $region23: #{tpu_custom_call.1} parent=1 // pred_check_branch
      %51 = sbr.rel (0) target = $region25
    $region24: #{tpu_custom_call.1} parent=1 // pred_region
      %52 = dma.done [#allocation4], 4096
    $region25: #{tpu_custom_call.1} parent=1 // pred_fallthru
      _
    // Predicated region
    $region26: #{tpu_custom_call.1} parent=1 // pred_check
      _
    $region27: #{tpu_custom_call.1} parent=1 // pred_check_branch
      %54 = sbr.rel (0) target = $region29
    $region28: #{tpu_custom_call.1} parent=1 // pred_region
      %55 = dma.done [#allocation9], 512
    $region29: #{tpu_custom_call.1} parent=1 // pred_fallthru
      _
    %56 = sfence
    %p57 = scmp.eq.s32.totalorder 0, 0
    // Predicated region
    $region30: #{tpu_custom_call.1} parent=1 // pred_check
      %p58 = pneg %p57
    $region31: #{tpu_custom_call.1} parent=1 // pred_check_branch
      %60 = sbr.rel (%p58) target = $region33
    $region32: #{tpu_custom_call.1} parent=1 // pred_region
      %61 = vst [vmem:[#allocation2] sm:$0xff] 0.0
      %62 = vst [vmem:[#allocation2 + $0x8] sm:$0xff] 0.0
      %63 = vst [vmem:[#allocation2 + $0x10] sm:$0xff] 0.0
      %64 = vst [vmem:[#allocation2 + $0x18] sm:$0xff] 0.0
      %65 = vst [vmem:[#allocation2 + $0x20] sm:$0xff] 0.0
      %66 = vst [vmem:[#allocation2 + $0x28] sm:$0xff] 0.0
      %67 = vst [vmem:[#allocation2 + $0x30] sm:$0xff] 0.0
      %68 = vst [vmem:[#allocation2 + $0x38] sm:$0xff] 0.0
    $region33: #{tpu_custom_call.1} parent=1 // pred_fallthru
      _
    %v69 = vld [vmem:[#allocation7] sm:$0xf]
    %v70 = vld [vmem:[#allocation7 + $0x20] sm:$0xf]
    %v71 = vld [vmem:[#allocation7 + $0x40] sm:$0xf]
    %v72 = vld [vmem:[#allocation7 + $0x60] sm:$0xf]
    %v73 = vld [vmem:[#allocation7 + $0x80] sm:$0xf]
    %v74 = vld [vmem:[#allocation7 + $0xa0] sm:$0xf]
    %v75 = vld [vmem:[#allocation7 + $0xc0] sm:$0xf]
    %v76 = vld [vmem:[#allocation7 + $0xe0] sm:$0xf]
    %v77 = vunpack.c.l.bf16 %v69
    %v78 = vunpack.c.l.bf16 %v70
    %v79 = vunpack.c.l.bf16 %v71
    %v80 = vunpack.c.l.bf16 %v72
    %v81 = vunpack.c.l.bf16 %v73
    %v82 = vunpack.c.l.bf16 %v74
    %v83 = vunpack.c.l.bf16 %v75
    %v84 = vunpack.c.l.bf16 %v76
    %v85 = vmax.f32 %v77, 1e-06
    %v86 = vmax.f32 %v78, 1e-06
    %v87 = vmax.f32 %v79, 1e-06
    %v88 = vmax.f32 %v80, 1e-06
    %v89 = vmax.f32 %v81, 1e-06
    %v90 = vmax.f32 %v82, 1e-06
    %v91 = vmax.f32 %v83, 1e-06
    %v92 = vmax.f32 %v84, 1e-06
    %v93 = vmul.f32 %v85, %v85
    %v94 = vmul.f32 %v86, %v86
    %v95 = vmul.f32 %v87, %v87
    %v96 = vmul.f32 %v88, %v88
    %v97 = vmul.f32 %v89, %v89
    %v98 = vmul.f32 %v90, %v90
    %v99 = vmul.f32 %v91, %v91
    %v100 = vmul.f32 %v92, %v92
    %v101 = vmul.f32 %v85, %v93
    %v102 = vmul.f32 %v86, %v94
    %v103 = vmul.f32 %v87, %v95
    %v104 = vmul.f32 %v88, %v96
    %v105 = vmul.f32 %v89, %v97
    %v106 = vmul.f32 %v90, %v98
    %v107 = vmul.f32 %v91, %v99
    %v108 = vmul.f32 %v92, %v100
    %v109 = vld [vmem:[#allocation2] sm:$0xff]
    %v110 = vld [vmem:[#allocation2 + $0x8] sm:$0xff]
    %v111 = vld [vmem:[#allocation2 + $0x10] sm:$0xff]
    %v112 = vld [vmem:[#allocation2 + $0x18] sm:$0xff]
    %v113 = vld [vmem:[#allocation2 + $0x20] sm:$0xff]
    %v114 = vld [vmem:[#allocation2 + $0x28] sm:$0xff]
    %v115 = vld [vmem:[#allocation2 + $0x30] sm:$0xff]
    %v116 = vld [vmem:[#allocation2 + $0x38] sm:$0xff]
    %v117 = vadd.f32 %v109, %v101
    %v118 = vadd.f32 %v110, %v102
    %v119 = vadd.f32 %v111, %v103
    %v120 = vadd.f32 %v112, %v104
    %v121 = vadd.f32 %v113, %v105
    %v122 = vadd.f32 %v114, %v106
    %v123 = vadd.f32 %v115, %v107
    %v124 = vadd.f32 %v116, %v108
    %125 = vst [vmem:[#allocation2] sm:$0xff] %v117
    %126 = vst [vmem:[#allocation2 + $0x8] sm:$0xff] %v118
    %127 = vst [vmem:[#allocation2 + $0x10] sm:$0xff] %v119
    %128 = vst [vmem:[#allocation2 + $0x18] sm:$0xff] %v120
    %129 = vst [vmem:[#allocation2 + $0x20] sm:$0xff] %v121
    %130 = vst [vmem:[#allocation2 + $0x28] sm:$0xff] %v122
    %131 = vst [vmem:[#allocation2 + $0x30] sm:$0xff] %v123
    %132 = vst [vmem:[#allocation2 + $0x38] sm:$0xff] %v124
    %v133 = vld [vmem:[#allocation7 + $0x4] sm:$0xf]
    %v134 = vld [vmem:[#allocation7 + $0x24] sm:$0xf]
    %v135 = vld [vmem:[#allocation7 + $0x44] sm:$0xf]
    %v136 = vld [vmem:[#allocation7 + $0x64] sm:$0xf]
    %v137 = vld [vmem:[#allocation7 + $0x84] sm:$0xf]
    %v138 = vld [vmem:[#allocation7 + $0xa4] sm:$0xf]
    %v139 = vld [vmem:[#allocation7 + $0xc4] sm:$0xf]
    %v140 = vld [vmem:[#allocation7 + $0xe4] sm:$0xf]
    %v141 = vunpack.c.l.bf16 %v133
    %v142 = vunpack.c.l.bf16 %v134
    %v143 = vunpack.c.l.bf16 %v135
    %v144 = vunpack.c.l.bf16 %v136
    %v145 = vunpack.c.l.bf16 %v137
    %v146 = vunpack.c.l.bf16 %v138
    %v147 = vunpack.c.l.bf16 %v139
    %v148 = vunpack.c.l.bf16 %v140
    %v149 = vmax.f32 %v141, 1e-06
    %v150 = vmax.f32 %v142, 1e-06
    %v151 = vmax.f32 %v143, 1e-06
    %v152 = vmax.f32 %v144, 1e-06
    %v153 = vmax.f32 %v145, 1e-06
    %v154 = vmax.f32 %v146, 1e-06
    %v155 = vmax.f32 %v147, 1e-06
    %v156 = vmax.f32 %v148, 1e-06
    %v157 = vmul.f32 %v149, %v149
    %v158 = vmul.f32 %v150, %v150
    %v159 = vmul.f32 %v151, %v151
    %v160 = vmul.f32 %v152, %v152
    %v161 = vmul.f32 %v153, %v153
    %v162 = vmul.f32 %v154, %v154
    %v163 = vmul.f32 %v155, %v155
    %v164 = vmul.f32 %v156, %v156
    %v165 = vmul.f32 %v149, %v157
    %v166 = vmul.f32 %v150, %v158
    %v167 = vmul.f32 %v151, %v159
    %v168 = vmul.f32 %v152, %v160
    %v169 = vmul.f32 %v153, %v161
    %v170 = vmul.f32 %v154, %v162
    %v171 = vmul.f32 %v155, %v163
    %v172 = vmul.f32 %v156, %v164
    %v173 = vld [vmem:[#allocation2] sm:$0xff]
    %v174 = vld [vmem:[#allocation2 + $0x8] sm:$0xff]
    %v175 = vld [vmem:[#allocation2 + $0x10] sm:$0xff]
    %v176 = vld [vmem:[#allocation2 + $0x18] sm:$0xff]
    %v177 = vld [vmem:[#allocation2 + $0x20] sm:$0xff]
    %v178 = vld [vmem:[#allocation2 + $0x28] sm:$0xff]
    %v179 = vld [vmem:[#allocation2 + $0x30] sm:$0xff]
    %v180 = vld [vmem:[#allocation2 + $0x38] sm:$0xff]
    %v181 = vadd.f32 %v173, %v165
    %v182 = vadd.f32 %v174, %v166
    %v183 = vadd.f32 %v175, %v167
    %v184 = vadd.f32 %v176, %v168
    %v185 = vadd.f32 %v177, %v169
    %v186 = vadd.f32 %v178, %v170
    %v187 = vadd.f32 %v179, %v171
    %v188 = vadd.f32 %v180, %v172
    %189 = vst [vmem:[#allocation2] sm:$0xff] %v181
    %190 = vst [vmem:[#allocation2 + $0x8] sm:$0xff] %v182
    %191 = vst [vmem:[#allocation2 + $0x10] sm:$0xff] %v183
    %192 = vst [vmem:[#allocation2 + $0x18] sm:$0xff] %v184
    %193 = vst [vmem:[#allocation2 + $0x20] sm:$0xff] %v185
    %194 = vst [vmem:[#allocation2 + $0x28] sm:$0xff] %v186
    %195 = vst [vmem:[#allocation2 + $0x30] sm:$0xff] %v187
    %196 = vst [vmem:[#allocation2 + $0x38] sm:$0xff] %v188
    %v197 = vld [vmem:[#allocation7 + $0x8] sm:$0xf]
    %v198 = vld [vmem:[#allocation7 + $0x28] sm:$0xf]
    %v199 = vld [vmem:[#allocation7 + $0x48] sm:$0xf]
    %v200 = vld [vmem:[#allocation7 + $0x68] sm:$0xf]
    %v201 = vld [vmem:[#allocation7 + $0x88] sm:$0xf]
    %v202 = vld [vmem:[#allocation7 + $0xa8] sm:$0xf]
    %v203 = vld [vmem:[#allocation7 + $0xc8] sm:$0xf]
    %v204 = vld [vmem:[#allocation7 + $0xe8] sm:$0xf]
    %v205 = vunpack.c.l.bf16 %v197
    %v206 = vunpack.c.l.bf16 %v198
    %v207 = vunpack.c.l.bf16 %v199
    %v208 = vunpack.c.l.bf16 %v200
    %v209 = vunpack.c.l.bf16 %v201
    %v210 = vunpack.c.l.bf16 %v202
    %v211 = vunpack.c.l.bf16 %v203
    %v212 = vunpack.c.l.bf16 %v204
    %v213 = vmax.f32 %v205, 1e-06
    %v214 = vmax.f32 %v206, 1e-06
    %v215 = vmax.f32 %v207, 1e-06
    %v216 = vmax.f32 %v208, 1e-06
    %v217 = vmax.f32 %v209, 1e-06
    %v218 = vmax.f32 %v210, 1e-06
    %v219 = vmax.f32 %v211, 1e-06
    %v220 = vmax.f32 %v212, 1e-06
    %v221 = vmul.f32 %v213, %v213
    %v222 = vmul.f32 %v214, %v214
    %v223 = vmul.f32 %v215, %v215
    %v224 = vmul.f32 %v216, %v216
    %v225 = vmul.f32 %v217, %v217
    %v226 = vmul.f32 %v218, %v218
    %v227 = vmul.f32 %v219, %v219
    %v228 = vmul.f32 %v220, %v220
    %v229 = vmul.f32 %v213, %v221
    %v230 = vmul.f32 %v214, %v222
    %v231 = vmul.f32 %v215, %v223
    %v232 = vmul.f32 %v216, %v224
    %v233 = vmul.f32 %v217, %v225
    %v234 = vmul.f32 %v218, %v226
    %v235 = vmul.f32 %v219, %v227
    %v236 = vmul.f32 %v220, %v228
    %v237 = vld [vmem:[#allocation2] sm:$0xff]
    %v238 = vld [vmem:[#allocation2 + $0x8] sm:$0xff]
    %v239 = vld [vmem:[#allocation2 + $0x10] sm:$0xff]
    %v240 = vld [vmem:[#allocation2 + $0x18] sm:$0xff]
    %v241 = vld [vmem:[#allocation2 + $0x20] sm:$0xff]
    %v242 = vld [vmem:[#allocation2 + $0x28] sm:$0xff]
    %v243 = vld [vmem:[#allocation2 + $0x30] sm:$0xff]
    %v244 = vld [vmem:[#allocation2 + $0x38] sm:$0xff]
    %v245 = vadd.f32 %v237, %v229
    %v246 = vadd.f32 %v238, %v230
    %v247 = vadd.f32 %v239, %v231
    %v248 = vadd.f32 %v240, %v232
    %v249 = vadd.f32 %v241, %v233
    %v250 = vadd.f32 %v242, %v234
    %v251 = vadd.f32 %v243, %v235
    %v252 = vadd.f32 %v244, %v236
    %253 = vst [vmem:[#allocation2] sm:$0xff] %v245
    %254 = vst [vmem:[#allocation2 + $0x8] sm:$0xff] %v246
    %255 = vst [vmem:[#allocation2 + $0x10] sm:$0xff] %v247
    %256 = vst [vmem:[#allocation2 + $0x18] sm:$0xff] %v248
    %257 = vst [vmem:[#allocation2 + $0x20] sm:$0xff] %v249
    %258 = vst [vmem:[#allocation2 + $0x28] sm:$0xff] %v250
    %259 = vst [vmem:[#allocation2 + $0x30] sm:$0xff] %v251
    %260 = vst [vmem:[#allocation2 + $0x38] sm:$0xff] %v252
    %v261 = vld [vmem:[#allocation7 + $0xc] sm:$0xf]
    %v262 = vld [vmem:[#allocation7 + $0x2c] sm:$0xf]
    %v263 = vld [vmem:[#allocation7 + $0x4c] sm:$0xf]
    %v264 = vld [vmem:[#allocation7 + $0x6c] sm:$0xf]
    %v265 = vld [vmem:[#allocation7 + $0x8c] sm:$0xf]
    %v266 = vld [vmem:[#allocation7 + $0xac] sm:$0xf]
    %v267 = vld [vmem:[#allocation7 + $0xcc] sm:$0xf]
    %v268 = vld [vmem:[#allocation7 + $0xec] sm:$0xf]
    %v269 = vunpack.c.l.bf16 %v261
    %v270 = vunpack.c.l.bf16 %v262
    %v271 = vunpack.c.l.bf16 %v263
    %v272 = vunpack.c.l.bf16 %v264
    %v273 = vunpack.c.l.bf16 %v265
    %v274 = vunpack.c.l.bf16 %v266
    %v275 = vunpack.c.l.bf16 %v267
    %v276 = vunpack.c.l.bf16 %v268
    %v277 = vmax.f32 %v269, 1e-06
    %v278 = vmax.f32 %v270, 1e-06
    %v279 = vmax.f32 %v271, 1e-06
    %v280 = vmax.f32 %v272, 1e-06
    %v281 = vmax.f32 %v273, 1e-06
    %v282 = vmax.f32 %v274, 1e-06
    %v283 = vmax.f32 %v275, 1e-06
    %v284 = vmax.f32 %v276, 1e-06
    %v285 = vmul.f32 %v277, %v277
    %v286 = vmul.f32 %v278, %v278
    %v287 = vmul.f32 %v279, %v279
    %v288 = vmul.f32 %v280, %v280
    %v289 = vmul.f32 %v281, %v281
    %v290 = vmul.f32 %v282, %v282
    %v291 = vmul.f32 %v283, %v283
    %v292 = vmul.f32 %v284, %v284
    %v293 = vmul.f32 %v277, %v285
    %v294 = vmul.f32 %v278, %v286
    %v295 = vmul.f32 %v279, %v287
    %v296 = vmul.f32 %v280, %v288
    %v297 = vmul.f32 %v281, %v289
    %v298 = vmul.f32 %v282, %v290
    %v299 = vmul.f32 %v283, %v291
    %v300 = vmul.f32 %v284, %v292
    %v301 = vld [vmem:[#allocation2] sm:$0xff]
    %v302 = vld [vmem:[#allocation2 + $0x8] sm:$0xff]
    %v303 = vld [vmem:[#allocation2 + $0x10] sm:$0xff]
    %v304 = vld [vmem:[#allocation2 + $0x18] sm:$0xff]
    %v305 = vld [vmem:[#allocation2 + $0x20] sm:$0xff]
    %v306 = vld [vmem:[#allocation2 + $0x28] sm:$0xff]
    %v307 = vld [vmem:[#allocation2 + $0x30] sm:$0xff]
    %v308 = vld [vmem:[#allocation2 + $0x38] sm:$0xff]
    %v309 = vadd.f32 %v301, %v293
    %v310 = vadd.f32 %v302, %v294
    %v311 = vadd.f32 %v303, %v295
    %v312 = vadd.f32 %v304, %v296
    %v313 = vadd.f32 %v305, %v297
    %v314 = vadd.f32 %v306, %v298
    %v315 = vadd.f32 %v307, %v299
    %v316 = vadd.f32 %v308, %v300
    %317 = vst [vmem:[#allocation2] sm:$0xff] %v309
    %318 = vst [vmem:[#allocation2 + $0x8] sm:$0xff] %v310
    %319 = vst [vmem:[#allocation2 + $0x10] sm:$0xff] %v311
    %320 = vst [vmem:[#allocation2 + $0x18] sm:$0xff] %v312
    %321 = vst [vmem:[#allocation2 + $0x20] sm:$0xff] %v313
    %322 = vst [vmem:[#allocation2 + $0x28] sm:$0xff] %v314
    %323 = vst [vmem:[#allocation2 + $0x30] sm:$0xff] %v315
    %324 = vst [vmem:[#allocation2 + $0x38] sm:$0xff] %v316
    %v325 = vld [vmem:[#allocation7 + $0x10] sm:$0xf]
    %v326 = vld [vmem:[#allocation7 + $0x30] sm:$0xf]
    %v327 = vld [vmem:[#allocation7 + $0x50] sm:$0xf]
    %v328 = vld [vmem:[#allocation7 + $0x70] sm:$0xf]
    %v329 = vld [vmem:[#allocation7 + $0x90] sm:$0xf]
    %v330 = vld [vmem:[#allocation7 + $0xb0] sm:$0xf]
    %v331 = vld [vmem:[#allocation7 + $0xd0] sm:$0xf]
    %v332 = vld [vmem:[#allocation7 + $0xf0] sm:$0xf]
    %v333 = vunpack.c.l.bf16 %v325
    %v334 = vunpack.c.l.bf16 %v326
    %v335 = vunpack.c.l.bf16 %v327
    %v336 = vunpack.c.l.bf16 %v328
    %v337 = vunpack.c.l.bf16 %v329
    %v338 = vunpack.c.l.bf16 %v330
    %v339 = vunpack.c.l.bf16 %v331
    %v340 = vunpack.c.l.bf16 %v332
    %v341 = vmax.f32 %v333, 1e-06
    %v342 = vmax.f32 %v334, 1e-06
    %v343 = vmax.f32 %v335, 1e-06
    %v344 = vmax.f32 %v336, 1e-06
    %v345 = vmax.f32 %v337, 1e-06
    %v346 = vmax.f32 %v338, 1e-06
    %v347 = vmax.f32 %v339, 1e-06
    %v348 = vmax.f32 %v340, 1e-06
    %v349 = vmul.f32 %v341, %v341
    %v350 = vmul.f32 %v342, %v342
    %v351 = vmul.f32 %v343, %v343
    %v352 = vmul.f32 %v344, %v344
    %v353 = vmul.f32 %v345, %v345
    %v354 = vmul.f32 %v346, %v346
    %v355 = vmul.f32 %v347, %v347
    %v356 = vmul.f32 %v348, %v348
    %v357 = vmul.f32 %v341, %v349
    %v358 = vmul.f32 %v342, %v350
    %v359 = vmul.f32 %v343, %v351
    %v360 = vmul.f32 %v344, %v352
    %v361 = vmul.f32 %v345, %v353
    %v362 = vmul.f32 %v346, %v354
    %v363 = vmul.f32 %v347, %v355
    %v364 = vmul.f32 %v348, %v356
    %v365 = vld [vmem:[#allocation2] sm:$0xff]
    %v366 = vld [vmem:[#allocation2 + $0x8] sm:$0xff]
    %v367 = vld [vmem:[#allocation2 + $0x10] sm:$0xff]
    %v368 = vld [vmem:[#allocation2 + $0x18] sm:$0xff]
    %v369 = vld [vmem:[#allocation2 + $0x20] sm:$0xff]
    %v370 = vld [vmem:[#allocation2 + $0x28] sm:$0xff]
    %v371 = vld [vmem:[#allocation2 + $0x30] sm:$0xff]
    %v372 = vld [vmem:[#allocation2 + $0x38] sm:$0xff]
    %v373 = vadd.f32 %v365, %v357
    %v374 = vadd.f32 %v366, %v358
    %v375 = vadd.f32 %v367, %v359
    %v376 = vadd.f32 %v368, %v360
    %v377 = vadd.f32 %v369, %v361
    %v378 = vadd.f32 %v370, %v362
    %v379 = vadd.f32 %v371, %v363
    %v380 = vadd.f32 %v372, %v364
    %381 = vst [vmem:[#allocation2] sm:$0xff] %v373
    %382 = vst [vmem:[#allocation2 + $0x8] sm:$0xff] %v374
    %383 = vst [vmem:[#allocation2 + $0x10] sm:$0xff] %v375
    %384 = vst [vmem:[#allocation2 + $0x18] sm:$0xff] %v376
    %385 = vst [vmem:[#allocation2 + $0x20] sm:$0xff] %v377
    %386 = vst [vmem:[#allocation2 + $0x28] sm:$0xff] %v378
    %387 = vst [vmem:[#allocation2 + $0x30] sm:$0xff] %v379
    %388 = vst [vmem:[#allocation2 + $0x38] sm:$0xff] %v380
    %v389 = vld [vmem:[#allocation7 + $0x14] sm:$0xf]
    %v390 = vld [vmem:[#allocation7 + $0x34] sm:$0xf]
    %v391 = vld [vmem:[#allocation7 + $0x54] sm:$0xf]
    %v392 = vld [vmem:[#allocation7 + $0x74] sm:$0xf]
    %v393 = vld [vmem:[#allocation7 + $0x94] sm:$0xf]
    %v394 = vld [vmem:[#allocation7 + $0xb4] sm:$0xf]
    %v395 = vld [vmem:[#allocation7 + $0xd4] sm:$0xf]
    %v396 = vld [vmem:[#allocation7 + $0xf4] sm:$0xf]
    %v397 = vunpack.c.l.bf16 %v389
    %v398 = vunpack.c.l.bf16 %v390
    %v399 = vunpack.c.l.bf16 %v391
    %v400 = vunpack.c.l.bf16 %v392
    %v401 = vunpack.c.l.bf16 %v393
    %v402 = vunpack.c.l.bf16 %v394
    %v403 = vunpack.c.l.bf16 %v395
    %v404 = vunpack.c.l.bf16 %v396
    %v405 = vmax.f32 %v397, 1e-06
    %v406 = vmax.f32 %v398, 1e-06
    %v407 = vmax.f32 %v399, 1e-06
    %v408 = vmax.f32 %v400, 1e-06
    %v409 = vmax.f32 %v401, 1e-06
    %v410 = vmax.f32 %v402, 1e-06
    %v411 = vmax.f32 %v403, 1e-06
    %v412 = vmax.f32 %v404, 1e-06
    %v413 = vmul.f32 %v405, %v405
    %v414 = vmul.f32 %v406, %v406
    %v415 = vmul.f32 %v407, %v407
    %v416 = vmul.f32 %v408, %v408
    %v417 = vmul.f32 %v409, %v409
    %v418 = vmul.f32 %v410, %v410
    %v419 = vmul.f32 %v411, %v411
    %v420 = vmul.f32 %v412, %v412
    %v421 = vmul.f32 %v405, %v413
    %v422 = vmul.f32 %v406, %v414
    %v423 = vmul.f32 %v407, %v415
    %v424 = vmul.f32 %v408, %v416
    %v425 = vmul.f32 %v409, %v417
    %v426 = vmul.f32 %v410, %v418
    %v427 = vmul.f32 %v411, %v419
    %v428 = vmul.f32 %v412, %v420
    %v429 = vld [vmem:[#allocation2] sm:$0xff]
    %v430 = vld [vmem:[#allocation2 + $0x8] sm:$0xff]
    %v431 = vld [vmem:[#allocation2 + $0x10] sm:$0xff]
    %v432 = vld [vmem:[#allocation2 + $0x18] sm:$0xff]
    %v433 = vld [vmem:[#allocation2 + $0x20] sm:$0xff]
    %v434 = vld [vmem:[#allocation2 + $0x28] sm:$0xff]
    %v435 = vld [vmem:[#allocation2 + $0x30] sm:$0xff]
    %v436 = vld [vmem:[#allocation2 + $0x38] sm:$0xff]
    %v437 = vadd.f32 %v429, %v421
    %v438 = vadd.f32 %v430, %v422
    %v439 = vadd.f32 %v431, %v423
    %v440 = vadd.f32 %v432, %v424
    %v441 = vadd.f32 %v433, %v425
    %v442 = vadd.f32 %v434, %v426
    %v443 = vadd.f32 %v435, %v427
    %v444 = vadd.f32 %v436, %v428
    %445 = vst [vmem:[#allocation2] sm:$0xff] %v437
    %446 = vst [vmem:[#allocation2 + $0x8] sm:$0xff] %v438
    %447 = vst [vmem:[#allocation2 + $0x10] sm:$0xff] %v439
    %448 = vst [vmem:[#allocation2 + $0x18] sm:$0xff] %v440
    %449 = vst [vmem:[#allocation2 + $0x20] sm:$0xff] %v441
    %450 = vst [vmem:[#allocation2 + $0x28] sm:$0xff] %v442
    %451 = vst [vmem:[#allocation2 + $0x30] sm:$0xff] %v443
    %452 = vst [vmem:[#allocation2 + $0x38] sm:$0xff] %v444
    %v453 = vld [vmem:[#allocation7 + $0x18] sm:$0xf]
    %v454 = vld [vmem:[#allocation7 + $0x38] sm:$0xf]
    %v455 = vld [vmem:[#allocation7 + $0x58] sm:$0xf]
    %v456 = vld [vmem:[#allocation7 + $0x78] sm:$0xf]
    %v457 = vld [vmem:[#allocation7 + $0x98] sm:$0xf]
    %v458 = vld [vmem:[#allocation7 + $0xb8] sm:$0xf]
    %v459 = vld [vmem:[#allocation7 + $0xd8] sm:$0xf]
    %v460 = vld [vmem:[#allocation7 + $0xf8] sm:$0xf]
    %v461 = vunpack.c.l.bf16 %v453
    %v462 = vunpack.c.l.bf16 %v454
    %v463 = vunpack.c.l.bf16 %v455
    %v464 = vunpack.c.l.bf16 %v456
    %v465 = vunpack.c.l.bf16 %v457
    %v466 = vunpack.c.l.bf16 %v458
    %v467 = vunpack.c.l.bf16 %v459
    %v468 = vunpack.c.l.bf16 %v460
    %v469 = vmax.f32 %v461, 1e-06
    %v470 = vmax.f32 %v462, 1e-06
    %v471 = vmax.f32 %v463, 1e-06
    %v472 = vmax.f32 %v464, 1e-06
    %v473 = vmax.f32 %v465, 1e-06
    %v474 = vmax.f32 %v466, 1e-06
    %v475 = vmax.f32 %v467, 1e-06
    %v476 = vmax.f32 %v468, 1e-06
    %v477 = vmul.f32 %v469, %v469
    %v478 = vmul.f32 %v470, %v470
    %v479 = vmul.f32 %v471, %v471
    %v480 = vmul.f32 %v472, %v472
    %v481 = vmul.f32 %v473, %v473
    %v482 = vmul.f32 %v474, %v474
    %v483 = vmul.f32 %v475, %v475
    %v484 = vmul.f32 %v476, %v476
    %v485 = vmul.f32 %v469, %v477
    %v486 = vmul.f32 %v470, %v478
    %v487 = vmul.f32 %v471, %v479
    %v488 = vmul.f32 %v472, %v480
    %v489 = vmul.f32 %v473, %v481
    %v490 = vmul.f32 %v474, %v482
    %v491 = vmul.f32 %v475, %v483
    %v492 = vmul.f32 %v476, %v484
    %v493 = vld [vmem:[#allocation2] sm:$0xff]
    %v494 = vld [vmem:[#allocation2 + $0x8] sm:$0xff]
    %v495 = vld [vmem:[#allocation2 + $0x10] sm:$0xff]
    %v496 = vld [vmem:[#allocation2 + $0x18] sm:$0xff]
    %v497 = vld [vmem:[#allocation2 + $0x20] sm:$0xff]
    %v498 = vld [vmem:[#allocation2 + $0x28] sm:$0xff]
    %v499 = vld [vmem:[#allocation2 + $0x30] sm:$0xff]
    %v500 = vld [vmem:[#allocation2 + $0x38] sm:$0xff]
    %v501 = vadd.f32 %v493, %v485
    %v502 = vadd.f32 %v494, %v486
    %v503 = vadd.f32 %v495, %v487
    %v504 = vadd.f32 %v496, %v488
    %v505 = vadd.f32 %v497, %v489
    %v506 = vadd.f32 %v498, %v490
    %v507 = vadd.f32 %v499, %v491
    %v508 = vadd.f32 %v500, %v492
    %509 = vst [vmem:[#allocation2] sm:$0xff] %v501
    %510 = vst [vmem:[#allocation2 + $0x8] sm:$0xff] %v502
    %511 = vst [vmem:[#allocation2 + $0x10] sm:$0xff] %v503
    %512 = vst [vmem:[#allocation2 + $0x18] sm:$0xff] %v504
    %513 = vst [vmem:[#allocation2 + $0x20] sm:$0xff] %v505
    %514 = vst [vmem:[#allocation2 + $0x28] sm:$0xff] %v506
    %515 = vst [vmem:[#allocation2 + $0x30] sm:$0xff] %v507
    %516 = vst [vmem:[#allocation2 + $0x38] sm:$0xff] %v508
    %v517 = vld [vmem:[#allocation7 + $0x1c] sm:$0xf]
    %v518 = vld [vmem:[#allocation7 + $0x3c] sm:$0xf]
    %v519 = vld [vmem:[#allocation7 + $0x5c] sm:$0xf]
    %v520 = vld [vmem:[#allocation7 + $0x7c] sm:$0xf]
    %v521 = vld [vmem:[#allocation7 + $0x9c] sm:$0xf]
    %v522 = vld [vmem:[#allocation7 + $0xbc] sm:$0xf]
    %v523 = vld [vmem:[#allocation7 + $0xdc] sm:$0xf]
    %v524 = vld [vmem:[#allocation7 + $0xfc] sm:$0xf]
    %v525 = vunpack.c.l.bf16 %v517
    %v526 = vunpack.c.l.bf16 %v518
    %v527 = vunpack.c.l.bf16 %v519
    %v528 = vunpack.c.l.bf16 %v520
    %v529 = vunpack.c.l.bf16 %v521
    %v530 = vunpack.c.l.bf16 %v522
    %v531 = vunpack.c.l.bf16 %v523
    %v532 = vunpack.c.l.bf16 %v524
    %v533 = vmax.f32 %v525, 1e-06
    %v534 = vmax.f32 %v526, 1e-06
    %v535 = vmax.f32 %v527, 1e-06
    %v536 = vmax.f32 %v528, 1e-06
    %v537 = vmax.f32 %v529, 1e-06
    %v538 = vmax.f32 %v530, 1e-06
    %v539 = vmax.f32 %v531, 1e-06
    %v540 = vmax.f32 %v532, 1e-06
    %v541 = vmul.f32 %v533, %v533
    %v542 = vmul.f32 %v534, %v534
    %v543 = vmul.f32 %v535, %v535
    %v544 = vmul.f32 %v536, %v536
    %v545 = vmul.f32 %v537, %v537
    %v546 = vmul.f32 %v538, %v538
    %v547 = vmul.f32 %v539, %v539
    %v548 = vmul.f32 %v540, %v540
    %v549 = vmul.f32 %v533, %v541
    %v550 = vmul.f32 %v534, %v542
    %v551 = vmul.f32 %v535, %v543
    %v552 = vmul.f32 %v536, %v544
    %v553 = vmul.f32 %v537, %v545
    %v554 = vmul.f32 %v538, %v546
    %v555 = vmul.f32 %v539, %v547
    %v556 = vmul.f32 %v540, %v548
    %v557 = vld [vmem:[#allocation2] sm:$0xff]
    %v558 = vld [vmem:[#allocation2 + $0x8] sm:$0xff]
    %v559 = vld [vmem:[#allocation2 + $0x10] sm:$0xff]
    %v560 = vld [vmem:[#allocation2 + $0x18] sm:$0xff]
    %v561 = vld [vmem:[#allocation2 + $0x20] sm:$0xff]
    %v562 = vld [vmem:[#allocation2 + $0x28] sm:$0xff]
    %v563 = vld [vmem:[#allocation2 + $0x30] sm:$0xff]
    %v564 = vld [vmem:[#allocation2 + $0x38] sm:$0xff]
    %v565 = vadd.f32 %v557, %v549
    %v566 = vadd.f32 %v558, %v550
    %v567 = vadd.f32 %v559, %v551
    %v568 = vadd.f32 %v560, %v552
    %v569 = vadd.f32 %v561, %v553
    %v570 = vadd.f32 %v562, %v554
    %v571 = vadd.f32 %v563, %v555
    %v572 = vadd.f32 %v564, %v556
    %573 = vst [vmem:[#allocation2] sm:$0xff] %v565
    %574 = vst [vmem:[#allocation2 + $0x8] sm:$0xff] %v566
    %575 = vst [vmem:[#allocation2 + $0x10] sm:$0xff] %v567
    %576 = vst [vmem:[#allocation2 + $0x18] sm:$0xff] %v568
    %577 = vst [vmem:[#allocation2 + $0x20] sm:$0xff] %v569
    %578 = vst [vmem:[#allocation2 + $0x28] sm:$0xff] %v570
    %579 = vst [vmem:[#allocation2 + $0x30] sm:$0xff] %v571
    %580 = vst [vmem:[#allocation2 + $0x38] sm:$0xff] %v572
    // Predicated region
    $region34: #{tpu_custom_call.1} parent=1 // pred_check
      %p581 = pneg %p57
    $region35: #{tpu_custom_call.1} parent=1 // pred_check_branch
      %583 = sbr.rel (%p581) target = $region37
    $region36: #{tpu_custom_call.1} parent=1 // pred_region
      %s584 = sld [smem:[#allocation3 + $0x1]]
      %s585 = sld [smem:[#allocation3 + $0x2]]
      %s586 = sld [smem:[#allocation3 + $0x3]]
      %v587 = vld [vmem:[#allocation2] sm:$0xff]
      %v588 = vld [vmem:[#allocation2 + $0x8] sm:$0xff]
      %v589 = vld [vmem:[#allocation2 + $0x10] sm:$0xff]
      %v590 = vld [vmem:[#allocation2 + $0x18] sm:$0xff]
      %v591 = vld [vmem:[#allocation2 + $0x20] sm:$0xff]
      %v592 = vld [vmem:[#allocation2 + $0x28] sm:$0xff]
      %v593 = vld [vmem:[#allocation2 + $0x30] sm:$0xff]
      %v594 = vld [vmem:[#allocation2 + $0x38] sm:$0xff]
      %595 = vadd.xlane.f32.xlu0 %v587
      %v596 = vpop.xlane.xlu0 %595
      %597 = vadd.xlane.f32.xlu0 %v588
      %v598 = vpop.xlane.xlu0 %597
      %599 = vadd.xlane.f32.xlu0 %v589
      %v600 = vpop.xlane.xlu0 %599
      %601 = vadd.xlane.f32.xlu0 %v590
      %v602 = vpop.xlane.xlu0 %601
      %603 = vadd.xlane.f32.xlu0 %v591
      %v604 = vpop.xlane.xlu0 %603
      %605 = vadd.xlane.f32.xlu0 %v592
      %v606 = vpop.xlane.xlu0 %605
      %607 = vadd.xlane.f32.xlu0 %v593
      %v608 = vpop.xlane.xlu0 %607
      %609 = vadd.xlane.f32.xlu0 %v594
      %v610 = vpop.xlane.xlu0 %609
      %v611 = vstv %s586
      %v612 = vsub.f32 %v596, %v611
      %v613 = vsub.f32 %v598, %v611
      %v614 = vsub.f32 %v600, %v611
      %v615 = vsub.f32 %v602, %v611
      %v616 = vsub.f32 %v604, %v611
      %v617 = vsub.f32 %v606, %v611
      %v618 = vsub.f32 %v608, %v611
      %v619 = vsub.f32 %v610, %v611
      %v620 = vstv %s585
      %v621 = vmul.f32 %v612, %v620
      %v622 = vmul.f32 %v613, %v620
      %v623 = vmul.f32 %v614, %v620
      %v624 = vmul.f32 %v615, %v620
      %v625 = vmul.f32 %v616, %v620
      %v626 = vmul.f32 %v617, %v620
      %v627 = vmul.f32 %v618, %v620
      %v628 = vmul.f32 %v619, %v620
      %v629 = vlog2.pop %v621
      %v630 = vmul.f32 %v629, 0.6931472
      %v631 = vlog2.pop %v622
      %v632 = vmul.f32 %v631, 0.6931472
      %v633 = vlog2.pop %v623
      %v634 = vmul.f32 %v633, 0.6931472
      %v635 = vlog2.pop %v624
      %v636 = vmul.f32 %v635, 0.6931472
      %v637 = vlog2.pop %v625
      %v638 = vmul.f32 %v637, 0.6931472
      %v639 = vlog2.pop %v626
      %v640 = vmul.f32 %v639, 0.6931472
      %v641 = vlog2.pop %v627
      %v642 = vmul.f32 %v641, 0.6931472
      %v643 = vlog2.pop %v628
      %v644 = vmul.f32 %v643, 0.6931472
      %v645 = vstv %s584
      %v646 = vmul.f32 %v630, %v645
      %v647 = vmul.f32 %v632, %v645
      %v648 = vmul.f32 %v634, %v645
      %v649 = vmul.f32 %v636, %v645
      %v650 = vmul.f32 %v638, %v645
      %v651 = vmul.f32 %v640, %v645
      %v652 = vmul.f32 %v642, %v645
      %v653 = vmul.f32 %v644, %v645
      %v654 = vmul.f32 %v646, 1.442695
      %v655 = vpow.pop %v654
      %v656 = vmul.f32 %v647, 1.442695
      %v657 = vpow.pop %v656
      %v658 = vmul.f32 %v648, 1.442695
      %v659 = vpow.pop %v658
      %v660 = vmul.f32 %v649, 1.442695
      %v661 = vpow.pop %v660
      %v662 = vmul.f32 %v650, 1.442695
      %v663 = vpow.pop %v662
      %v664 = vmul.f32 %v651, 1.442695
      %v665 = vpow.pop %v664
      %v666 = vmul.f32 %v652, 1.442695
      %v667 = vpow.pop %v666
      %v668 = vmul.f32 %v653, 1.442695
      %v669 = vpow.pop %v668
      %v670 = vld [vmem:[#allocation8] sm:$0xff]
      %v671 = vld [vmem:[#allocation8 + $0x8] sm:$0xff]
      %v672 = vld [vmem:[#allocation8 + $0x10] sm:$0xff]
      %v673 = vld [vmem:[#allocation8 + $0x18] sm:$0xff]
      %v674 = vld [vmem:[%s3] sm:$0x1]
      %v676 = vlaneseq
      %v677 = vshrl.u32 %v676, 7
      %v678 = vsub.s32 0, %v677
      %v679 = vrot.slane %v674, %v678
      %v689 = vlaneseq
      %v690 = vand.u32 %v689, 127
      %v691 = vlaneseq
      %v692 = vshrl.u32 %v691, 7
      %v693 = vsub.s32 %v690, %v692
      %v694 = vrot.slane %v655, %v693
      %v695 = vadd.s32 %v690, 4294967288
      %v696 = vlaneseq
      %v697 = vshrl.u32 %v696, 7
      %v698 = vsub.s32 %v695, %v697
      %v699 = vrot.slane %v657, %v698
      %vm700 = vcmask 130112
      %v701 = vsel %vm700, %v699, %v694
      %v702 = vadd.s32 %v690, 4294967280
      %v703 = vlaneseq
      %v704 = vshrl.u32 %v703, 7
      %v705 = vsub.s32 %v702, %v704
      %v706 = vrot.slane %v659, %v705
      %vm707 = vcmask 195712
      %v708 = vsel %vm707, %v706, %v701
      %v709 = vadd.s32 %v690, 4294967272
      %v710 = vlaneseq
      %v711 = vshrl.u32 %v710, 7
      %v712 = vsub.s32 %v709, %v711
      %v713 = vrot.slane %v661, %v712
      %vm714 = vcmask 261312
      %v715 = vsel %vm714, %v713, %v708
      %v716 = vlaneseq
      %v717 = vshrl.u32 %v716, 7
      %v718 = vsub.s32 %v690, %v717
      %v719 = vrot.slane %v663, %v718
      %v720 = vlaneseq
      %v721 = vshrl.u32 %v720, 7
      %v722 = vsub.s32 %v695, %v721
      %v723 = vrot.slane %v665, %v722
      %v724 = vsel %vm700, %v723, %v719
      %v725 = vlaneseq
      %v726 = vshrl.u32 %v725, 7
      %v727 = vsub.s32 %v702, %v726
      %v728 = vrot.slane %v667, %v727
      %v729 = vsel %vm707, %v728, %v724
      %v730 = vlaneseq
      %v731 = vshrl.u32 %v730, 7
      %v732 = vsub.s32 %v709, %v731
      %v733 = vrot.slane %v669, %v732
      %v734 = vsel %vm714, %v733, %v729
      %vm735 = vcmask 1041409
      %v736 = vsel %vm735, %v734, %v715
      %vm737 = vcmask 261120
      %v738 = vsel %vm737, %v736, 0
      %740 = vmatprep.subr.mxu0 0.0
      %741 = vmatpush1.msra.mxu0 %v670
      %742 = vmatprep.subr.mxu0 0.0
      %743 = vmatpush1.msra.mxu0 %v671
      %744 = vmatprep.subr.mxu0 0.0
      %745 = vmatpush1.msra.mxu0 %v672
      %746 = vmatprep.subr.mxu0 0.0
      %747 = vmatpush1.msra.mxu0 %v673
      %748 = vmatprep.subr.mxu0 0.0
      %749 = vmatpush1.msra.mxu0 0.0
      %750 = vmatprep.subr.mxu0 0.0
      %751 = vmatpush1.msra.mxu0 0.0
      %752 = vmatprep.subr.mxu0 0.0
      %753 = vmatpush1.msra.mxu0 0.0
      %754 = vmatprep.subr.mxu0 0.0
      %755 = vmatpush1.msra.mxu0 0.0
      %756 = vmatprep.subr.mxu0 0.0
      %757 = vmatpush1.msra.mxu0 0.0
      %758 = vmatprep.subr.mxu0 0.0
      %759 = vmatpush1.msra.mxu0 0.0
      %760 = vmatprep.subr.mxu0 0.0
      %761 = vmatpush1.msra.mxu0 0.0
      %762 = vmatprep.subr.mxu0 0.0
      %763 = vmatpush1.msra.mxu0 0.0
      %764 = vmatprep.subr.mxu0 0.0
      %765 = vmatpush1.msra.mxu0 0.0
      %766 = vmatprep.subr.mxu0 0.0
      %767 = vmatpush1.msra.mxu0 0.0
      %768 = vmatprep.subr.mxu0 0.0
      %769 = vmatpush1.msra.mxu0 0.0
      %770 = vmatprep.subr.mxu0 0.0
      %771 = vmatpush1.msra.mxu0 0.0
      %772 = vmatprep.subr.mxu0 0.0
      %773 = vmatpush1.msra.mxu0 0.0
      %774 = vmatprep.subr.mxu0 0.0
      %775 = vmatpush1.msra.mxu0 0.0
      %776 = vmatprep.subr.mxu0 0.0
      %777 = vmatpush1.msra.mxu0 0.0
      %778 = vmatprep.subr.mxu0 0.0
      %779 = vmatpush1.msra.mxu0 0.0
      %780 = vmatprep.subr.mxu0 0.0
      %781 = vmatpush1.msra.mxu0 0.0
      %782 = vmatprep.subr.mxu0 0.0
      %783 = vmatpush1.msra.mxu0 0.0
      %784 = vmatprep.subr.mxu0 0.0
      %785 = vmatpush1.msra.mxu0 0.0
      %786 = vmatprep.subr.mxu0 0.0
      %787 = vmatpush1.msra.mxu0 0.0
      %788 = vmatprep.subr.mxu0 0.0
      %789 = vmatpush1.msra.mxu0 0.0
      %790 = vmatprep.subr.mxu0 0.0
      %791 = vmatpush1.msra.mxu0 0.0
      %792 = vmatprep.subr.mxu0 0.0
      %793 = vmatpush1.msra.mxu0 0.0
      %794 = vmatprep.subr.mxu0 0.0
      %795 = vmatpush1.msra.mxu0 0.0
      %796 = vmatprep.subr.mxu0 0.0
      %797 = vmatpush1.msra.mxu0 0.0
      %798 = vmatprep.subr.mxu0 0.0
      %799 = vmatpush1.msra.mxu0 0.0
      %800 = vmatprep.subr.mxu0 0.0
      %801 = vmatpush1.msra.mxu0 0.0
      %802 = vmatprep.subr.mxu0 0.0
      %803 = vmatpush1.msra.mxu0 0.0
      %804 = vmatprep.mubr.f32.mxu0 0.0
      %805 = vmatmul.mubr.f32.gmra.mrb[0].mxu0 %v738
      %v806 = vpop.f32.mrb[0].mxu0
      %v807 = vadd.f32 %v679, %v806
      %v808 = vpop.f32.mrb[0].mxu0
      %809 = vdwg.mxu0
      %810 = vst [vmem:[#allocation10] sm:$0x3] %v807
    $region37: #{tpu_custom_call.1} parent=1 // pred_fallthru
      _
    // Predicated region
    $region38: #{tpu_custom_call.1} parent=1 // pred_check
      _
    $region39: #{tpu_custom_call.1} parent=1 // pred_check_branch
      %812 = sbr.rel (0) target = $region41
    $region40: #{tpu_custom_call.1} parent=1 // pred_region
      %s814 = ssub.s32 32, 32
      %815 = vsyncadd [#allocation5], %s814
      %s817 = sshll.u32 [#allocation10], 4
      %s818 = int_to_ptr.vmem [resolvable:$true] %s817
      %820 = dma.vmem_to_hbm [thread:$0]  %s818, 32, %s4, [#allocation5]
    $region41: #{tpu_custom_call.1} parent=1 // pred_fallthru
      _
    // Predicated region
    $region42: #{tpu_custom_call.1} parent=1 // pred_check
      _
    $region43: #{tpu_custom_call.1} parent=1 // pred_check_branch
      %822 = sbr.rel (0) target = $region45
    $region44: #{tpu_custom_call.1} parent=1 // pred_region
      %823 = dma.done [#allocation5], 32
    $region45: #{tpu_custom_call.1} parent=1 // pred_fallthru
      _
    %824 = vsyncpa [#allocation4], 1
    %825 = vsyncpa [#allocation9], 1
    %826 = vsyncpa [#allocation5], 1
    %827 = vsyncpa [#allocation6], 1

</llo_original>
